<compile_context>
chip_gen: v5e
topology: v5e:2x2
jax: 0.10.0
libtpu: 0.0.40
codegen_flags: <defaults>
</compile_context>

<pallas_src>
import functools

import jax
import jax.numpy as jnp
from jax import lax
from jax.experimental import pallas as pl
from jax.experimental.pallas import tpu as pltpu


def _contrastive_loss_kernel(x0_ref, x1_ref, y_ref, out_ref, *, margin, n_valid, tile_n):
    i = pl.program_id(0)

    # Upcast narrow dtypes per-tile inside the kernel (VPU work, hidden under DMA).
    x0 = x0_ref[...].astype(jnp.float32)                  # (tile_n, D)
    x1 = x1_ref[...].astype(jnp.float32)                  # (tile_n, D)

    # torch.nn.functional.pairwise_distance(p=2, eps=1e-6) semantics:
    #   dist_i = || x0_i - x1_i + eps ||_2  over the last dim.
    diff = x0 - x1 + 1e-6
    sq = jnp.sum(diff * diff, axis=-1, keepdims=True)     # (tile_n, 1)
    dist = jnp.sqrt(sq)                                    # (tile_n, 1)

    y = y_ref[...]                                         # (tile_n, 1) f32
    hinge = jnp.maximum(margin - dist, 0.0)                # clamp(min=0)
    h2 = hinge * hinge
    # y*sq + (1-y)*h2 == h2 + y*(sq - h2): one fewer VPU op on the thin column.
    per_row = h2 + y * (sq - h2)

    # Mask rows past the true batch size (ragged last tile -> DMA-padded rows).
    # The select stays *after* every op touching padded rows so NaN/Inf from the
    # padded DMA region is always discarded.
    row = i * tile_n + lax.broadcasted_iota(jnp.int32, per_row.shape, 0)
    per_row = jnp.where(row < n_valid, per_row, 0.0)

    # Raw partial sum; the single 0.5 / N scale is applied once outside.
    out_ref[0, 0] = jnp.sum(per_row)


def _round_up(x, m):
    return ((x + m - 1) // m) * m


def _vmem_budget():
    """Returns (per-step working-set budget, vmem_limit_bytes), generation-aware."""
    try:
        cap = int(pltpu.get_tpu_info().vmem_capacity_bytes)
    except Exception:
        cap = 64 << 20           # assume the tightest generation (v7x) if the query fails
    if cap >= (100 << 20):       # v5e / v6e: 128 MiB physical VMEM
        return 32 << 20, 64 << 20
    return 24 << 20, 48 << 20    # v7x: 64 MiB physical / 32 MiB scoped default


def contrastive_loss(x0, x1, y, margin=1.0, tile_n=None):
    """x0, x1: (N, D) float/bf16; y: (N,) 0/1 labels. Returns scalar loss."""
    n, d = x0.shape
    y2 = y.astype(jnp.float32).reshape(n, 1)
    itemsize = jnp.dtype(x0.dtype).itemsize

    budget, vmem_limit = _vmem_budget()
    if tile_n is None:
        # Per-row VMEM working set for one grid step:
        #   * x0 + x1 blocks, double-buffered by the pipeline,
        #   * f32 temporaries of the elementwise chain (upcasts/diff/diff^2)
        #     that get materialised for a (tile_n, D) tile (~2 chains for f32
        #     inputs, ~3 when an upcast from bf16/fp16 is needed),
        #   * the (tile_n, 1) y block, lane-padded to 128 lanes, double-buffered.
        in_bytes = 2 * (2 * d * itemsize)
        tmp_bytes = (2 if itemsize >= 4 else 3) * d * 4
        y_bytes = 2 * 128 * 4
        tile_n = budget // (in_bytes + tmp_bytes + y_bytes)
    tile_n = int(tile_n)
    # Multiple of 8 sublanes; bounded by the byte budget (up to 32K rows) rather
    # than a small fixed row cap, so small-D inputs still get multi-MB blocks.
    tile_n = max(8, (min(tile_n, 32768, _round_up(n, 8)) // 8) * 8)

    num_tiles = pl.cdiv(n, tile_n)

    cost = pl.CostEstimate(
        flops=4 * n * d + 8 * n,
        transcendentals=n,                      # the sqrt
        bytes_accessed=2 * n * d * itemsize + n * 4 + num_tiles * 4,
    )

    partials = pl.pallas_call(
        functools.partial(
            _contrastive_loss_kernel,
            margin=float(margin),
            n_valid=n,
            tile_n=tile_n,
        ),
        out_shape=jax.ShapeDtypeStruct((num_tiles, 1), jnp.float32),
        grid=(num_tiles,),
        in_specs=[
            pl.BlockSpec((tile_n, d), lambda i: (i, 0)),
            pl.BlockSpec((tile_n, d), lambda i: (i, 0)),
            pl.BlockSpec((tile_n, 1), lambda i: (i, 0)),
        ],
        out_specs=pl.BlockSpec(
            (1, 1), lambda i: (i, 0), memory_space=pltpu.MemorySpace.SMEM
        ),
        compiler_params=pltpu.CompilerParams(
            dimension_semantics=("parallel",),   # independent partial sums -> megacore OK
            vmem_limit_bytes=vmem_limit,
        ),
        cost_estimate=cost,
    )(x0, x1, y2)

    # Tiny finalize in plain JAX: sum partials, single fused 0.5/N scale.
    return jnp.sum(partials) * (0.5 / n)


def _reference(x0, x1, y, margin=1.0):
    diff = x0.astype(jnp.float32) - x1.astype(jnp.float32) + 1e-6
    sq = jnp.sum(diff * diff, axis=-1)
    dist = jnp.sqrt(sq)
    hinge = jnp.maximum(margin - dist, 0.0)
    loss = y * sq + (1.0 - y) * hinge**2
    return jnp.sum(loss) / 2.0 / x0.shape[0]


if __name__ == "__main__":
    key = jax.random.PRNGKey(0)
    k0, k1, ky, k2, k3, k4 = jax.random.split(key, 6)

    # Small shape implied by the module: a batch of embedding pairs.
    N, D = 8, 32
    x0 = jax.random.normal(k0, (N, D), dtype=jnp.float32)
    x1 = jax.random.normal(k1, (N, D), dtype=jnp.float32)
    y = jax.random.bernoulli(ky, 0.5, (N,)).astype(jnp.float32)

    loss = jax.block_until_ready(contrastive_loss(x0, x1, y, margin=1.0))
    ref = _reference(x0, x1, y, margin=1.0)
    assert jnp.allclose(loss, ref, rtol=1e-5, atol=1e-5), (loss, ref)

    # Ragged, multi-tile case: exercises the grid, pipelining and row masking.
    N2, D2 = 300, 64
    a0 = jax.random.normal(k2, (N2, D2), dtype=jnp.float32)
    a1 = jax.random.normal(k3, (N2, D2), dtype=jnp.float32)
    yb = jax.random.bernoulli(k4, 0.5, (N2,)).astype(jnp.float32)

    loss2 = jax.block_until_ready(contrastive_loss(a0, a1, yb, margin=1.0, tile_n=128))
    ref2 = _reference(a0, a1, yb, margin=1.0)
    assert jnp.allclose(loss2, ref2, rtol=1e-5, atol=1e-5), (loss2, ref2)

    print("KERNEL_OK")
</pallas_src>

<mosaic_0001>
module attributes {stable_mosaic.version = 11 : i64} {
  func.func @_contrastive_loss_kernel(%arg0: i32, %arg1: memref<8x32xf32, #tpu.memory_space<vmem>>, %arg2: memref<8x32xf32, #tpu.memory_space<vmem>>, %arg3: memref<8x1xf32, #tpu.memory_space<vmem>>, %arg4: memref<1x1xf32, #tpu.memory_space<smem>>) attributes {dimension_semantics = [#tpu.dimension_semantics<parallel>], iteration_bounds = array<i64: 1>, scalar_prefetch = 0 : i64, scratch_operands = 0 : i64, tpu.core_type = #tpu.core_type<tc>, window_params = [{transform_indices = @transform_0, window_bounds = array<i64: 8, 32>}, {transform_indices = @transform_1, window_bounds = array<i64: 8, 32>}, {transform_indices = @transform_2, window_bounds = array<i64: 8, 1>}, {transform_indices = @transform_3, window_bounds = array<i64: 1, 1>}]} {
    %c0 = arith.constant 0 : index
    %c0_0 = arith.constant 0 : index
    %0 = vector.load %arg1[%c0, %c0_0] : memref<8x32xf32, #tpu.memory_space<vmem>>, vector<8x32xf32>
    %c0_1 = arith.constant 0 : index
    %c0_2 = arith.constant 0 : index
    %1 = vector.load %arg2[%c0_1, %c0_2] : memref<8x32xf32, #tpu.memory_space<vmem>>, vector<8x32xf32>
    %2 = arith.subf %0, %1 : vector<8x32xf32>
    %cst = arith.constant 9.99999997E-7 : f32
    %3 = vector.broadcast %cst : f32 to vector<8x32xf32>
    %4 = arith.addf %2, %3 : vector<8x32xf32>
    %5 = arith.mulf %4, %4 : vector<8x32xf32>
    %cst_3 = arith.constant dense<0.000000e+00> : vector<8xf32>
    %6 = vector.multi_reduction <add>, %5, %cst_3 [1] : vector<8x32xf32> to vector<8xf32>
    %7 = vector.shape_cast %6 : vector<8xf32> to vector<8x1xf32>
    %8 = math.sqrt %7 : vector<8x1xf32>
    %c0_4 = arith.constant 0 : index
    %c0_5 = arith.constant 0 : index
    %9 = vector.load %arg3[%c0_4, %c0_5] : memref<8x1xf32, #tpu.memory_space<vmem>>, vector<8x1xf32>
    %cst_6 = arith.constant 1.000000e+00 : f32
    %10 = vector.broadcast %cst_6 : f32 to vector<8x1xf32>
    %11 = arith.subf %10, %8 : vector<8x1xf32>
    %cst_7 = arith.constant 0.000000e+00 : f32
    %12 = vector.broadcast %cst_7 : f32 to vector<8x1xf32>
    %13 = arith.maximumf %11, %12 : vector<8x1xf32>
    %14 = arith.mulf %13, %13 : vector<8x1xf32>
    %15 = arith.subf %7, %14 : vector<8x1xf32>
    %16 = arith.mulf %9, %15 : vector<8x1xf32>
    %17 = arith.addf %14, %16 : vector<8x1xf32>
    %c8_i32 = arith.constant 8 : i32
    %18 = arith.muli %arg0, %c8_i32 : i32
    %19 = tpu.iota {dimensions = array<i32: 0>} : vector<8x1xi32>
    %20 = vector.broadcast %18 : i32 to vector<8x1xi32>
    %21 = arith.addi %20, %19 : vector<8x1xi32>
    %c8_i32_8 = arith.constant 8 : i32
    %22 = vector.broadcast %c8_i32_8 : i32 to vector<8x1xi32>
    %23 = arith.cmpi slt, %21, %22 : vector<8x1xi32>
    %cst_9 = arith.constant 0.000000e+00 : f32
    %24 = vector.broadcast %cst_9 : f32 to vector<8x1xf32>
    %25 = arith.select %23, %17, %24 : vector<8x1xi1>, vector<8x1xf32>
    %26 = vector.shape_cast %25 : vector<8x1xf32> to vector<1x8x1xf32>
    %cst_10 = arith.constant dense<0.000000e+00> : vector<1xf32>
    %27 = vector.multi_reduction <add>, %26, %cst_10 [1, 2] : vector<1x8x1xf32> to vector<1xf32>
    %28 = vector.shape_cast %27 : vector<1xf32> to vector<1x1x1xf32>
    %29 = vector.extract %28[0, 0, 0] : f32 from vector<1x1x1xf32>
    %c0_11 = arith.constant 0 : index
    %c0_12 = arith.constant 0 : index
    %30 = memref.load %arg4[%c0_11, %c0_12] : memref<1x1xf32, #tpu.memory_space<smem>>
    memref.store %29, %arg4[%c0_11, %c0_12] : memref<1x1xf32, #tpu.memory_space<smem>>
    return
  }
  func.func @transform_0(%arg0: i32) -> (i32, i32) {
    %c0_i32 = arith.constant 0 : i32
    %c0_i32_0 = arith.constant 0 : i32
    return %arg0, %c0_i32 : i32, i32
  }
  func.func @transform_1(%arg0: i32) -> (i32, i32) {
    %c0_i32 = arith.constant 0 : i32
    %c0_i32_0 = arith.constant 0 : i32
    return %arg0, %c0_i32 : i32, i32
  }
  func.func @transform_2(%arg0: i32) -> (i32, i32) {
    %c0_i32 = arith.constant 0 : i32
    %c0_i32_0 = arith.constant 0 : i32
    return %arg0, %c0_i32 : i32, i32
  }
  func.func @transform_3(%arg0: i32) -> (i32, i32) {
    %c0_i32 = arith.constant 0 : i32
    %c0_i32_0 = arith.constant 0 : i32
    return %arg0, %c0_i32 : i32, i32
  }
}

</mosaic_0001>

<llo_original>
// kernel: tpu_custom_call.1
$region0: #{tpu_custom_call.1}
  #allocation0 [shape = 'u32[]', space=smem, size = 0x4, offset = 0x4, fixed_abs, tag = 'smem constant byte address 0x4 - core index']
  #allocation1 [shape = 'u32[72,128]{1,0:T(1,128)}', space=vmem, size = 0x9000, scoped, tag = 'internal scratch']
  %s0 = inlined_call_operand.vmem [shape: f32[8,32], index: 0, kind: input, shape index: {}]
  %s1 = inlined_call_operand.hbm [shape: f32[8,32], index: 1, kind: input, shape index: {}]
  %s2 = inlined_call_operand.vmem [shape: f32[8,1], index: 2, kind: input, shape index: {}]
  %s3 = inlined_call_operand.hbm [shape: f32[1,1], index: 3, kind: output, shape index: {}]
  %s4 = sld [smem:[#allocation0]]
  $region26: #{tpu_custom_call.1} parent=0
    _
  %s6 = ssub.s32 1, %s4
  %s7 = scalar_select 0, %s6, %s4
  $region1: #{tpu_custom_call.1} parent=0
    #allocation2 [shape = 'u8[4096]{0}', space=vmem, size = 0x1000, scoped, tag = 'input window, operand 1, single buffered']
    #allocation3 [shape = 's32[1]{0}', space=sflag, size = 0x4, scoped, tag = 'scoped memory for tpu_custom_call.1']
    #allocation4 [shape = 's32[1]{0}', space=sflag, size = 0x4, scoped, tag = 'scoped memory for tpu_custom_call.1']
    #allocation5 [shape = 'u8[512]{0}', space=smem, size = 0x200, scoped, tag = 'output window, operand 0, single buffered']
    %8 = vsyncpa [#allocation3], 0
    %9 = vsyncpa [#allocation4], 0
    // Predicated region
    $region2: #{tpu_custom_call.1} parent=1 // pred_check
      _
    $region3: #{tpu_custom_call.1} parent=1 // pred_check_branch
      %11 = sbr.rel (0) target = $region5
    $region4: #{tpu_custom_call.1} parent=1 // pred_region
      _
    $region5: #{tpu_custom_call.1} parent=1 // pred_fallthru
      _
    // Predicated region
    $region6: #{tpu_custom_call.1} parent=1 // pred_check
      _
    $region7: #{tpu_custom_call.1} parent=1 // pred_check_branch
      %13 = sbr.rel (0) target = $region9
    $region8: #{tpu_custom_call.1} parent=1 // pred_region
      %15 = vsyncadd [#allocation3], 0
      %s17 = sshll.u32 %s1, 4
      %s18 = int_to_ptr.hbm [resolvable:$true] %s17
      %s19 = sshll.u32 [#allocation2], 4
      %s20 = int_to_ptr.vmem [resolvable:$true] %s19
      %22 = dma.hbm_to_vmem [thread:$0]  %s18, 128, %s20, [#allocation3]
    $region9: #{tpu_custom_call.1} parent=1 // pred_fallthru
      _
    // Predicated region
    $region10: #{tpu_custom_call.1} parent=1 // pred_check
      _
    $region11: #{tpu_custom_call.1} parent=1 // pred_check_branch
      %24 = sbr.rel (0) target = $region13
    $region12: #{tpu_custom_call.1} parent=1 // pred_region
      _
    $region13: #{tpu_custom_call.1} parent=1 // pred_fallthru
      _
    // Predicated region
    $region14: #{tpu_custom_call.1} parent=1 // pred_check
      _
    $region15: #{tpu_custom_call.1} parent=1 // pred_check_branch
      %26 = sbr.rel (0) target = $region17
    $region16: #{tpu_custom_call.1} parent=1 // pred_region
      %28 = dma.done [#allocation3], 128
    $region17: #{tpu_custom_call.1} parent=1 // pred_fallthru
      _
    %v29 = vld [vmem:[%s0] sm:$0xff]
    %v30 = vld [vmem:[#allocation2] sm:$0xff]
    %v31 = vsub.f32 %v29, %v30
    %v32 = vadd.f32 %v31, 1e-06
    %v33 = vmul.f32 %v32, %v32
    %vm34 = vcmask 261120
    %v35 = vsel %vm34, %v33, 0.0
    %36 = vadd.xlane.f32.xlu0 %v35
    %v37 = vpop.xlane.xlu0 %36
    %v38 = vrsqrt.pop %v37
    %v39 = vmul.f32 %v38, %v37
    %v40 = vmul.f32 %v39, %v38
    %v41 = vmul.f32 0.5, %v40
    %v42 = vsub.f32 1.5, %v41
    %v43 = vmul.f32 %v38, %v42
    %v44 = vmul.f32 %v37, %v43
    %vm45 = vcmp.eq.f32.partialorder %v37, inf
    %v46 = vsel %vm45, %v37, %v44
    %vm47 = vcmp.eq.f32.partialorder %v37, 0.0
    %v48 = vand.u32 %v37, 2147483648
    %v49 = vsel %vm47, %v48, %v46
    %v50 = vld [vmem:[%s2] sm:$0xff]
    %v51 = vsub.f32 1.0, %v49
    %v52 = vmax.f32 %v51, 0.0
    %v53 = vmul.f32 %v52, %v52
    %v54 = vsub.f32 %v37, %v53
    %v55 = vmul.f32 %v50, %v54
    %v56 = vadd.f32 %v53, %v55
    %s57 = smul.u32 0, 8
    %v58 = vlaneseq
    %v59 = vshrl.u32 %v58, 7
    %v60 = vstv %s57
    %v61 = vadd.s32 %v60, %v59
    %vm62 = vcmp.lt.s32.totalorder %v61, 8
    %v63 = vsel %vm62, %v56, 0.0
    %vm64 = vcmask 7168
    %v65 = vsel %vm64, %v63, 0.0
    %66 = vadd.xlane.f32.xlu0 %v65
    %v67 = vpop.xlane.xlu0 %66
    %v68 = vrot.slane %v67, 4
    %v69 = vadd.f32 %v67, %v68
    %v70 = vrot.slane %v69, 2
    %v71 = vadd.f32 %v69, %v70
    %v72 = vrot.slane %v71, 1
    %v73 = vadd.f32 %v71, %v72
    %s74 = vtos %v73
    %s75 = scalar_lea.smem [#allocation5], 0
    %76 = sst [smem:[%s75]] %s74
    // Predicated region
    $region18: #{tpu_custom_call.1} parent=1 // pred_check
      _
    $region19: #{tpu_custom_call.1} parent=1 // pred_check_branch
      %78 = sbr.rel (0) target = $region21
    $region20: #{tpu_custom_call.1} parent=1 // pred_region
      %80 = vsyncadd [#allocation4], 0
      %s82 = sshll.u32 %s3, 4
      %s83 = int_to_ptr.hbm [resolvable:$true] %s82
      %85 = dma.smem_to_hbm [#allocation5], 16, %s83, [#allocation4]
    $region21: #{tpu_custom_call.1} parent=1 // pred_fallthru
      _
    // Predicated region
    $region22: #{tpu_custom_call.1} parent=1 // pred_check
      _
    $region23: #{tpu_custom_call.1} parent=1 // pred_check_branch
      %87 = sbr.rel (0) target = $region25
    $region24: #{tpu_custom_call.1} parent=1 // pred_region
      %89 = dma.done [#allocation4], 16
    $region25: #{tpu_custom_call.1} parent=1 // pred_fallthru
      _
    %90 = sfence
    %91 = vsyncpa [#allocation3], 1
    %92 = vsyncpa [#allocation4], 1

</llo_original>
